<compile_context>
chip_gen: v6e
topology: v6e:2x2x1
jax: 0.10.0
libtpu: 0.0.40
codegen_flags: <defaults>
</compile_context>

<pallas_src>
import jax
import jax.numpy as jnp
from jax.experimental import pallas as pl
from jax.experimental.pallas import tpu as pltpu


def _copy_kernel(x_ref, o_ref):
    # Whole-tile load + store; purely DMA / HBM-bandwidth bound.
    o_ref[...] = x_ref[...]


def _vmem_budget_bytes() -> int:
    """Generation-aware scoped-VMEM budget (<= half physical, <= 64 MiB)."""
    default = 64 * 1024 * 1024
    try:
        info = pltpu.get_tpu_info()
        vmem = int(getattr(info, "vmem_capacity_bytes", default))
    except Exception:
        vmem = default
    return min(64 * 1024 * 1024, max(16 * 1024 * 1024, vmem // 2))


def _pick_cols(total_elems: int, last_dim: int) -> int:
    """Lane-dense column count (multiple of 128), preferring choices that also
    leave a sublane-aligned (multiple of 8) row count."""
    candidates = [c for c in (2048, 1024, 512, 256, 128) if total_elems % c == 0]
    for c in candidates:
        if (total_elems // c) % 8 == 0:
            return c
    if candidates:
        return candidates[0]
    # Fallback: the original embed dim as the lane axis (block last dim then
    # equals the full array dim, which is always legal).
    return last_dim


def _pick_tile_rows(rows: int, cols: int, itemsize: int, max_block_bytes: int) -> int:
    """Largest multiple-of-8 row tile within the per-block byte cap.
    Ragged last blocks are allowed (pl.cdiv grid), so no divisibility search."""
    if rows <= 8:
        # Whole-array block: legal regardless of (8, 128) divisibility.
        return rows
    row_bytes = cols * itemsize
    t = (max_block_bytes // row_bytes) // 8 * 8
    t = max(8, min(t, (rows // 8) * 8))
    grid = pl.cdiv(rows, t)
    if grid > 1 and grid % 2 == 1:
        # Prefer an even number of grid steps so v7x's two TensorCores stay
        # balanced under dimension_semantics=("parallel",).
        t2 = ((pl.cdiv(rows, grid + 1) + 7) // 8) * 8
        if 8 <= t2 <= t:
            t = t2
    return t


def _concat_pooling_pallas(x: jax.Array) -> jax.Array:
    """Explicit Pallas identity copy (only for fusion/kernel boundaries)."""
    b, s, d = x.shape
    total = x.size
    itemsize = jnp.dtype(x.dtype).itemsize

    cols = _pick_cols(total, d)
    rows = total // cols

    vmem_limit = _vmem_budget_bytes()
    # Auto-pipelining double-buffers both the input and output tiles
    # (~4x block bytes of VMEM); keep ample headroom within the scoped limit.
    max_block_bytes = max(8 * cols * itemsize, vmem_limit // 8)
    tile_rows = _pick_tile_rows(rows, cols, itemsize, max_block_bytes)
    grid = (pl.cdiv(rows, tile_rows),)

    x2d = x.reshape(rows, cols)

    out2d = pl.pallas_call(
        _copy_kernel,
        out_shape=jax.ShapeDtypeStruct((rows, cols), x.dtype),
        grid=grid,
        in_specs=[pl.BlockSpec((tile_rows, cols), lambda i: (i, 0))],
        out_specs=pl.BlockSpec((tile_rows, cols), lambda i: (i, 0)),
        # Output aliases the input buffer: no extra HBM allocation, and under
        # jit-with-donation no defensive copy.
        input_output_aliases={0: 0},
        compiler_params=pltpu.CompilerParams(
            dimension_semantics=("parallel",),
            vmem_limit_bytes=vmem_limit,
        ),
    )(x2d)

    return out2d.reshape(b, s, d)


def concat_pooling(x: jax.Array, *, force_kernel: bool = False) -> jax.Array:
    """ConcatPooling.forward: identity over (batch, seq_length, embed_dim).

    Default path returns `x` untouched — zero data movement beats any copy
    kernel. Set force_kernel=True only when an explicit Pallas kernel boundary
    is required (e.g. composition / fusion boundaries).
    """
    if not force_kernel:
        return x
    return _concat_pooling_pallas(x)


if __name__ == "__main__":
    key = jax.random.PRNGKey(0)
    batch, seq, embed = 2, 8, 32
    x = jax.random.normal(key, (batch, seq, embed), dtype=jnp.float32)

    # Optimal path: pure identity, no kernel launched.
    out_fast = concat_pooling(x)
    out_fast = jax.block_until_ready(out_fast)
    assert out_fast.shape == (batch, seq, embed)
    assert bool(jnp.all(out_fast == x))

    # Explicit Pallas kernel path (run once to validate the kernel itself).
    out = concat_pooling(x, force_kernel=True)
    out = jax.block_until_ready(out)

    assert out.shape == (batch, seq, embed), out.shape
    assert out.dtype == x.dtype
    assert bool(jnp.all(out == x)), "identity mismatch"

    print("KERNEL_OK")
</pallas_src>

<mosaic_0001>
module attributes {stable_mosaic.version = 11 : i64} {
  func.func @_copy_kernel(%arg0: i32, %arg1: memref<1x512xf32, #tpu.memory_space<vmem>>, %arg2: memref<1x512xf32, #tpu.memory_space<vmem>>) attributes {dimension_semantics = [#tpu.dimension_semantics<parallel>], iteration_bounds = array<i64: 1>, scalar_prefetch = 0 : i64, scratch_operands = 0 : i64, tpu.core_type = #tpu.core_type<tc>, window_params = [{transform_indices = @transform_0, window_bounds = array<i64: 1, 512>}, {transform_indices = @transform_1, window_bounds = array<i64: 1, 512>}]} {
    %c0 = arith.constant 0 : index
    %c0_0 = arith.constant 0 : index
    %0 = vector.load %arg1[%c0, %c0_0] : memref<1x512xf32, #tpu.memory_space<vmem>>, vector<1x512xf32>
    %c0_1 = arith.constant 0 : index
    %c0_2 = arith.constant 0 : index
    %1 = vector.load %arg2[%c0_1, %c0_2] : memref<1x512xf32, #tpu.memory_space<vmem>>, vector<1x512xf32>
    tpu.vector_store %arg2[%c0_1, %c0_2], %0 {strides = array<i32>} : memref<1x512xf32, #tpu.memory_space<vmem>>, vector<1x512xf32>,
    return
  }
  func.func @transform_0(%arg0: i32) -> (i32, i32) {
    %c0_i32 = arith.constant 0 : i32
    %c0_i32_0 = arith.constant 0 : i32
    return %arg0, %c0_i32 : i32, i32
  }
  func.func @transform_1(%arg0: i32) -> (i32, i32) {
    %c0_i32 = arith.constant 0 : i32
    %c0_i32_0 = arith.constant 0 : i32
    return %arg0, %c0_i32 : i32, i32
  }
}

</mosaic_0001>

<llo_original>
// kernel: tpu_custom_call.1
$region0: #{tpu_custom_call.1}
  #allocation0 [shape = 'u32[]', space=smem, size = 0x4, offset = 0x4, fixed_abs, tag = 'smem constant byte address 0x4 - core index']
  #allocation1 [shape = 'u32[144,128]{1,0:T(1,128)}', space=vmem, size = 0x12000, scoped, tag = 'internal scratch']
  %s0 = inlined_call_operand.hbm [shape: f32[1,512], index: 0, kind: input, shape index: {}, may-alias: {0,1}]
  %s1 = inlined_call_operand.hbm [shape: f32[1,512], index: 1, kind: output, shape index: {}, may-alias: {0,1}]
  %s2 = sld [smem:[#allocation0]]
  $region18: #{tpu_custom_call.1} parent=0
    _
  %s4 = ssub.s32 1, %s2
  %s5 = scalar_select 0, %s4, %s2
  $region1: #{tpu_custom_call.1} parent=0
    #allocation2 [shape = 'u8[2048]{0}', space=vmem, size = 0x800, scoped, tag = 'input window, operand 0, single buffered']
    #allocation3 [shape = 's32[1]{0}', space=sflag, size = 0x4, scoped, tag = 'scoped memory for tpu_custom_call.1']
    #allocation4 [shape = 's32[1]{0}', space=sflag, size = 0x4, scoped, tag = 'scoped memory for tpu_custom_call.1']
    #allocation5 [shape = 'u8[2048]{0}', space=vmem, size = 0x800, scoped, tag = 'output window, operand 0, single buffered']
    %6 = vsyncpa [#allocation3], 0
    %7 = vsyncpa [#allocation4], 0
    // Predicated region
    $region2: #{tpu_custom_call.1} parent=1 // pred_check
      _
    $region3: #{tpu_custom_call.1} parent=1 // pred_check_branch
      %9 = sbr.rel (0) target = $region5
    $region4: #{tpu_custom_call.1} parent=1 // pred_region
      %s11 = ssub.s32 64, 64
      %12 = vsyncadd [#allocation3], %s11
      %s14 = sshll.u32 [#allocation2], 4
      %s15 = int_to_ptr.vmem [resolvable:$true] %s14
      %17 = dma.hbm_to_vmem [thread:$0]  %s0, 64, %s15, [#allocation3]
    $region5: #{tpu_custom_call.1} parent=1 // pred_fallthru
      _
    // Predicated region
    $region6: #{tpu_custom_call.1} parent=1 // pred_check
      _
    $region7: #{tpu_custom_call.1} parent=1 // pred_check_branch
      %19 = sbr.rel (0) target = $region9
    $region8: #{tpu_custom_call.1} parent=1 // pred_region
      %20 = dma.done [#allocation3], 64
    $region9: #{tpu_custom_call.1} parent=1 // pred_fallthru
      _
    %v21 = vld [vmem:[#allocation2] sm:$0xf]
    %v22 = vlaneseq
    %vm23 = vcmp.ge.s32.totalorder %v22, 0
    %vm24 = vcmp.lt.s32.totalorder %v22, 512
    %vm25 = vmand %vm23, %vm24
    %26 = vst.msk [vmem:[#allocation5] sm:$0xf] %vm25, %v21
    // Predicated region
    $region10: #{tpu_custom_call.1} parent=1 // pred_check
      _
    $region11: #{tpu_custom_call.1} parent=1 // pred_check_branch
      %28 = sbr.rel (0) target = $region13
    $region12: #{tpu_custom_call.1} parent=1 // pred_region
      %s30 = ssub.s32 64, 64
      %31 = vsyncadd [#allocation4], %s30
      %s33 = sshll.u32 [#allocation5], 4
      %s34 = int_to_ptr.vmem [resolvable:$true] %s33
      %36 = dma.vmem_to_hbm [thread:$0]  %s34, 64, %s1, [#allocation4]
    $region13: #{tpu_custom_call.1} parent=1 // pred_fallthru
      _
    // Predicated region
    $region14: #{tpu_custom_call.1} parent=1 // pred_check
      _
    $region15: #{tpu_custom_call.1} parent=1 // pred_check_branch
      %38 = sbr.rel (0) target = $region17
    $region16: #{tpu_custom_call.1} parent=1 // pred_region
      %39 = dma.done [#allocation4], 64
    $region17: #{tpu_custom_call.1} parent=1 // pred_fallthru
      _
    %40 = vsyncpa [#allocation3], 1
    %41 = vsyncpa [#allocation4], 1

</llo_original>
